<compile_context>
chip_gen: v5e
topology: v5e:2x2
jax: 0.10.0
libtpu: 0.0.40
codegen_flags: <defaults>
</compile_context>

<pallas_src>
import numpy as np
import jax
import jax.numpy as jnp
from jax.experimental import pallas as pl
from jax.experimental.pallas import tpu as pltpu

N_NON_BAND = 5      # stand-in for len(CSVProcessor non-band columns) - 1 ('som' removed)
N_CELLS = 9         # 3x3 grid of cells
CELL_W = 14         # columns per cell in the raw slab
N_BAND = 12         # bands actually used per cell
H1 = 20             # hidden width of linear1
H2 = 20             # hidden width of linear2
NEG_SLOPE = 0.01    # nn.LeakyReLU default negative_slope

K_IN = N_NON_BAND + N_CELLS * CELL_W     # 131  (full raw feature width)
W1_COLS = N_CELLS * H1                   # 180  (9 cells x 20 hidden)
WA_COLS = W1_COLS + N_BAND               # 192  (+ 12 raw centre-skip lanes)


def ann_avg_skip_kernel(x_ref, wA_ref, biasA_ref, slopeA_ref, wB_ref,
                        b3_ref, w4_ref, b4_ref, o_ref):
    # Raw (TN, 131) rows; non-band / dropped columns hit zero weight rows.
    x = x_ref[...].astype(wA_ref.dtype)

    # Contraction 1: block-diagonal linear1[0] for all 9 cells + identity
    # centre-skip columns, in ONE MXU pass (K=131, N=192 -> same padded tiles).
    a = jnp.dot(x, wA_ref[...], preferred_element_type=jnp.float32) + biasA_ref[...]

    # Column-masked LeakyReLU: slope 0.01 on the 180 MLP columns, slope 1.0 on
    # the 12 centre-skip columns (which must pass through unchanged).
    act = jnp.maximum(a, slopeA_ref[...] * a)                  # (TN, 192) f32

    # Contraction 2: fused [linear1[2] -> mean -> linear2[0]] plus the centre
    # skip term (w3[12:24] lives in the last 12 rows of W_B).  b2@w3a is folded
    # into b3 on the host.
    z = jnp.dot(act.astype(wB_ref.dtype), wB_ref[...],
                preferred_element_type=jnp.float32) + b3_ref[...]
    h2 = jnp.maximum(z, NEG_SLOPE * z)                         # (TN, 20) f32

    # linear2[2]: 20 -> 1 on the VPU + lane reduce (no 1-wide MXU push).
    out = jnp.sum(h2 * w4_ref[...], axis=-1, keepdims=True) + b4_ref[...]
    o_ref[...] = out.astype(o_ref.dtype)


def build_fused_params(params, compute_dtype=jnp.float32):
    """Host-side (numpy) fusion of the 9-cell structure, the 14->12 column drop,
    the non-band column drop, the mean, linear1[2]->linear2[0] and the centre
    skip into two dense weights. Call ONCE and reuse (hoisted off the per-call
    path). Biases / slope stay float32."""
    w1, b1, w2, b2, w3, b3, w4, b4 = [np.asarray(p, np.float32) for p in params]
    b1, b2, b3, b4 = b1.reshape(-1), b2.reshape(-1), b3.reshape(-1), b4.reshape(-1)

    # W_A: (131, 192). Block-diagonal w1 per cell over the raw input rows
    # (rows for non-band columns and dropped columns 12,13 stay zero), plus an
    # identity block routing the centre cell's 12 raw bands to the last 12 cols.
    wA = np.zeros((K_IN, WA_COLS), np.float32)
    for c in range(N_CELLS):
        r0 = N_NON_BAND + c * CELL_W
        wA[r0:r0 + N_BAND, c * H1:(c + 1) * H1] = w1
    rc = N_NON_BAND + 4 * CELL_W
    wA[rc:rc + N_BAND, W1_COLS:W1_COLS + N_BAND] = np.eye(N_BAND, dtype=np.float32)

    bias_a = np.concatenate([np.tile(b1, N_CELLS), np.zeros(N_BAND, np.float32)])
    slope_a = np.concatenate([np.full(W1_COLS, NEG_SLOPE, np.float32),
                              np.ones(N_BAND, np.float32)])

    # W_B: (192, 20) = [ tile(w2 @ w3[:12], 9) / 9  ;  w3[12:24] ]
    w3a = w3[:N_BAND, :]                 # acts on x2_mean
    w3c = w3[N_BAND:2 * N_BAND, :]       # acts on the raw centre bands
    wB = np.concatenate([np.tile(w2 @ w3a, (N_CELLS, 1)) / N_CELLS, w3c], axis=0)
    b3f = b3 + b2 @ w3a                  # fold the +b2 of linear1[2]

    cd = compute_dtype
    return (jnp.asarray(wA, cd),
            jnp.asarray(bias_a.reshape(1, WA_COLS), jnp.float32),
            jnp.asarray(slope_a.reshape(1, WA_COLS), jnp.float32),
            jnp.asarray(wB, cd),
            jnp.asarray(b3f.reshape(1, H2), jnp.float32),
            jnp.asarray(w4.reshape(1, H2), jnp.float32),
            jnp.asarray(b4.reshape(1, 1), jnp.float32))


def _const_spec(shape):
    # Whole-array block, same block at every grid step (weights / biases).
    return pl.BlockSpec(shape, lambda i: (0, 0))


def ann_avg_skip_forward(x, fused, *, tile_n=2048):
    """x: (N, 131) raw feature rows (non-band columns included, any float dtype).
    `fused` is the tuple from build_fused_params (built once, reused).
    Returns (N, 1) float32."""
    n, k = x.shape
    assert k == K_IN, f"expected {K_IN} input columns, got {k}"

    # Large, 16-aligned batch tile (safe for bf16 sublane packing).
    n16 = -(-n // 16) * 16
    tile = max(16, min(int(tile_n), n16))
    tile = -(-tile // 16) * 16
    # If the whole batch would be a single tile but is big enough, split it so
    # the "parallel" axis has >=2 grid steps (v7x 2-TC / megacore sharding).
    if n16 >= 512 and tile >= n16:
        tile = max(16, -(-(n16 // 2) // 16) * 16)

    n_pad = -(-n // tile) * tile
    if n_pad != n:
        x = jnp.pad(x, ((0, n_pad - n), (0, 0)))   # padded rows sliced off below

    grid = (n_pad // tile,)
    in_specs = [pl.BlockSpec((tile, K_IN), lambda i: (i, 0))]
    in_specs += [_const_spec(tuple(p.shape)) for p in fused]

    out = pl.pallas_call(
        ann_avg_skip_kernel,
        out_shape=jax.ShapeDtypeStruct((n_pad, 1), jnp.float32),
        grid_spec=pltpu.PrefetchScalarGridSpec(
            num_scalar_prefetch=0,
            grid=grid,
            in_specs=in_specs,
            out_specs=pl.BlockSpec((tile, 1), lambda i: (i, 0)),
        ),
        # Batch axis is embarrassingly parallel -> megacore / v7x 2-TC sharding.
        # VMEM at tile=2048: ~1 MiB double-buffered f32 input block, ~0.2 MiB of
        # weights and a few MiB of (TN, 256-lane) intermediates — comfortably
        # under the scoped-VMEM defaults on v5e/v6e/v7x, so no override needed.
        compiler_params=pltpu.CompilerParams(
            dimension_semantics=("parallel",)),
    )(x, *fused)
    return out[:n]


def init_params(key):
    """Deterministic init mimicking nn.Linear's U(-1/sqrt(fan_in), 1/sqrt(fan_in))."""
    def linear(key, fan_in, fan_out):
        kw, kb = jax.random.split(key)
        bound = 1.0 / jnp.sqrt(fan_in)
        w = jax.random.uniform(kw, (fan_in, fan_out), jnp.float32, -bound, bound)
        b = jax.random.uniform(kb, (1, fan_out), jnp.float32, -bound, bound)
        return w, b

    k1, k2, k3, k4 = jax.random.split(key, 4)
    w1, b1 = linear(k1, 12, 20)   # linear1[0]
    w2, b2 = linear(k2, 20, 12)   # linear1[2]
    w3, b3 = linear(k3, 24, 20)   # linear2[0]
    w4, b4 = linear(k4, 20, 1)    # linear2[2]
    return (w1, b1, w2, b2, w3, b3, w4, b4)


def ann_avg_skip_reference(x, params):
    """Pure-JAX reference (per-cell formulation, mirrors the PyTorch module)."""
    w1, b1, w2, b2, w3, b3, w4, b4 = params
    xb = x[:, N_NON_BAND:]
    n = xb.shape[0]
    xb = xb.reshape(n, N_CELLS, CELL_W)[:, :, :N_BAND].astype(jnp.float32)
    h = jnp.maximum(jnp.einsum("nij,jk->nik", xb, w1) + b1[None],
                    NEG_SLOPE * (jnp.einsum("nij,jk->nik", xb, w1) + b1[None]))
    x2 = jnp.einsum("nik,kj->nij", h, w2) + b2[None]
    x2 = jnp.mean(x2, axis=1)
    cat = jnp.concatenate([x2, xb[:, 4, :]], axis=1)
    z = cat @ w3 + b3
    h2 = jnp.maximum(z, NEG_SLOPE * z)
    return h2 @ w4 + b4


# TODO(synk): train_model/evaluate/test (optimizer, DataLoader, R2 logging) are
# host-side training utilities and are intentionally not kernelized.

if __name__ == "__main__":
    key = jax.random.PRNGKey(0)
    kx, kp = jax.random.split(key)

    batch = 8
    n_features = K_IN                                  # 5 non-band + 126 band = 131
    x = jax.random.normal(kx, (batch, n_features), jnp.float32)
    params = init_params(kp)
    ref = ann_avg_skip_reference(x, params)

    # Fused weights built ONCE on the host and reused across calls.
    fused_f32 = build_fused_params(params, jnp.float32)

    # float32 compute path (default, semantics-preserving).
    out_f32 = jax.block_until_ready(ann_avg_skip_forward(x, fused_f32))
    assert out_f32.shape == (batch, 1)
    assert jnp.allclose(out_f32, ref, atol=1e-2, rtol=1e-2), "f32 mismatch vs reference"

    # bfloat16 compute path (explicit opt-in throughput mode; f32 accumulation).
    fused_bf16 = build_fused_params(params, jnp.bfloat16)
    out_bf16 = jax.block_until_ready(ann_avg_skip_forward(x, fused_bf16))
    assert out_bf16.shape == (batch, 1)
    assert jnp.allclose(out_bf16, ref, atol=5e-2, rtol=5e-2), "bf16 mismatch vs reference"

    # Ragged, multi-block batch exercises the padding path and a >1-step grid.
    batch2 = 300
    x2 = jax.random.normal(jax.random.PRNGKey(1), (batch2, n_features), jnp.float32)
    ref2 = ann_avg_skip_reference(x2, params)
    out2 = jax.block_until_ready(ann_avg_skip_forward(x2, fused_f32, tile_n=128))
    assert out2.shape == (batch2, 1)
    assert jnp.allclose(out2, ref2, atol=1e-2, rtol=1e-2), "ragged-batch mismatch"

    print("KERNEL_OK")
</pallas_src>

<mosaic_0001>
module attributes {stable_mosaic.version = 11 : i64} {
  func.func @ann_avg_skip_kernel(%arg0: i32, %arg1: memref<16x131xf32, #tpu.memory_space<vmem>>, %arg2: memref<131x192xf32, #tpu.memory_space<vmem>>, %arg3: memref<1x192xf32, #tpu.memory_space<vmem>>, %arg4: memref<1x192xf32, #tpu.memory_space<vmem>>, %arg5: memref<192x20xf32, #tpu.memory_space<vmem>>, %arg6: memref<1x20xf32, #tpu.memory_space<vmem>>, %arg7: memref<1x20xf32, #tpu.memory_space<vmem>>, %arg8: memref<1x1xf32, #tpu.memory_space<vmem>>, %arg9: memref<16x1xf32, #tpu.memory_space<vmem>>) attributes {dimension_semantics = [#tpu.dimension_semantics<parallel>], iteration_bounds = array<i64: 1>, scalar_prefetch = 0 : i64, scratch_operands = 0 : i64, tpu.core_type = #tpu.core_type<tc>, window_params = [{transform_indices = @transform_0, window_bounds = array<i64: 16, 131>}, {pipeline_mode = #tpu.pipeline_mode<synchronous>, transform_indices = @transform_1, window_bounds = array<i64: 131, 192>}, {pipeline_mode = #tpu.pipeline_mode<synchronous>, transform_indices = @transform_2, window_bounds = array<i64: 1, 192>}, {pipeline_mode = #tpu.pipeline_mode<synchronous>, transform_indices = @transform_3, window_bounds = array<i64: 1, 192>}, {pipeline_mode = #tpu.pipeline_mode<synchronous>, transform_indices = @transform_4, window_bounds = array<i64: 192, 20>}, {pipeline_mode = #tpu.pipeline_mode<synchronous>, transform_indices = @transform_5, window_bounds = array<i64: 1, 20>}, {pipeline_mode = #tpu.pipeline_mode<synchronous>, transform_indices = @transform_6, window_bounds = array<i64: 1, 20>}, {pipeline_mode = #tpu.pipeline_mode<synchronous>, transform_indices = @transform_7, window_bounds = array<i64: 1, 1>}, {transform_indices = @transform_8, window_bounds = array<i64: 16, 1>}]} {
    %c0 = arith.constant 0 : index
    %c0_0 = arith.constant 0 : index
    %0 = vector.load %arg1[%c0, %c0_0] : memref<16x131xf32, #tpu.memory_space<vmem>>, vector<16x131xf32>
    %c0_1 = arith.constant 0 : index
    %c0_2 = arith.constant 0 : index
    %1 = vector.load %arg2[%c0_1, %c0_2] : memref<131x192xf32, #tpu.memory_space<vmem>>, vector<131x192xf32>
    %cst = arith.constant dense<0.000000e+00> : vector<16x192xf32>
    %2 = tpu.matmul %0, %1, %cst {dimension_numbers = #tpu.dot_dimension_numbers<[1], [0], [0], [1], [0, 0, 1, 1], [], []>} : vector<16x131xf32>, vector<131x192xf32>, vector<16x192xf32> -> vector<16x192xf32>
    %c0_3 = arith.constant 0 : index
    %c0_4 = arith.constant 0 : index
    %3 = vector.load %arg3[%c0_3, %c0_4] : memref<1x192xf32, #tpu.memory_space<vmem>>, vector<1x192xf32>
    %4 = vector.broadcast %3 : vector<1x192xf32> to vector<16x192xf32>
    %5 = arith.addf %2, %4 : vector<16x192xf32>
    %c0_5 = arith.constant 0 : index
    %c0_6 = arith.constant 0 : index
    %6 = vector.load %arg4[%c0_5, %c0_6] : memref<1x192xf32, #tpu.memory_space<vmem>>, vector<1x192xf32>
    %7 = vector.broadcast %6 : vector<1x192xf32> to vector<16x192xf32>
    %8 = arith.mulf %7, %5 : vector<16x192xf32>
    %9 = arith.maximumf %5, %8 : vector<16x192xf32>
    %c0_7 = arith.constant 0 : index
    %c0_8 = arith.constant 0 : index
    %10 = vector.load %arg5[%c0_7, %c0_8] : memref<192x20xf32, #tpu.memory_space<vmem>>, vector<192x20xf32>
    %cst_9 = arith.constant dense<0.000000e+00> : vector<16x20xf32>
    %11 = tpu.matmul %9, %10, %cst_9 {dimension_numbers = #tpu.dot_dimension_numbers<[1], [0], [0], [1], [0, 0, 1, 1], [], []>} : vector<16x192xf32>, vector<192x20xf32>, vector<16x20xf32> -> vector<16x20xf32>
    %c0_10 = arith.constant 0 : index
    %c0_11 = arith.constant 0 : index
    %12 = vector.load %arg6[%c0_10, %c0_11] : memref<1x20xf32, #tpu.memory_space<vmem>>, vector<1x20xf32>
    %13 = vector.broadcast %12 : vector<1x20xf32> to vector<16x20xf32>
    %14 = arith.addf %11, %13 : vector<16x20xf32>
    %cst_12 = arith.constant 0.00999999977 : f32
    %15 = vector.broadcast %cst_12 : f32 to vector<16x20xf32>
    %16 = arith.mulf %15, %14 : vector<16x20xf32>
    %17 = arith.maximumf %14, %16 : vector<16x20xf32>
    %c0_13 = arith.constant 0 : index
    %c0_14 = arith.constant 0 : index
    %18 = vector.load %arg7[%c0_13, %c0_14] : memref<1x20xf32, #tpu.memory_space<vmem>>, vector<1x20xf32>
    %19 = vector.broadcast %18 : vector<1x20xf32> to vector<16x20xf32>
    %20 = arith.mulf %17, %19 : vector<16x20xf32>
    %cst_15 = arith.constant dense<0.000000e+00> : vector<16xf32>
    %21 = vector.multi_reduction <add>, %20, %cst_15 [1] : vector<16x20xf32> to vector<16xf32>
    %22 = vector.shape_cast %21 : vector<16xf32> to vector<16x1xf32>
    %c0_16 = arith.constant 0 : index
    %c0_17 = arith.constant 0 : index
    %23 = vector.load %arg8[%c0_16, %c0_17] : memref<1x1xf32, #tpu.memory_space<vmem>>, vector<1x1xf32>
    %24 = vector.broadcast %23 : vector<1x1xf32> to vector<16x1xf32>
    %25 = arith.addf %22, %24 : vector<16x1xf32>
    %c0_18 = arith.constant 0 : index
    %c0_19 = arith.constant 0 : index
    %26 = vector.load %arg9[%c0_18, %c0_19] : memref<16x1xf32, #tpu.memory_space<vmem>>, vector<16x1xf32>
    tpu.vector_store %arg9[%c0_18, %c0_19], %25 {strides = array<i32>} : memref<16x1xf32, #tpu.memory_space<vmem>>, vector<16x1xf32>,
    return
  }
  func.func @transform_0(%arg0: i32) -> (i32, i32) {
    %c0_i32 = arith.constant 0 : i32
    %c0_i32_0 = arith.constant 0 : i32
    return %arg0, %c0_i32 : i32, i32
  }
  func.func @transform_1(%arg0: i32) -> (i32, i32) {
    %c0_i32 = arith.constant 0 : i32
    %c0_i32_0 = arith.constant 0 : i32
    %c0_i32_1 = arith.constant 0 : i32
    return %c0_i32, %c0_i32_0 : i32, i32
  }
  func.func @transform_2(%arg0: i32) -> (i32, i32) {
    %c0_i32 = arith.constant 0 : i32
    %c0_i32_0 = arith.constant 0 : i32
    %c0_i32_1 = arith.constant 0 : i32
    return %c0_i32, %c0_i32_0 : i32, i32
  }
  func.func @transform_3(%arg0: i32) -> (i32, i32) {
    %c0_i32 = arith.constant 0 : i32
    %c0_i32_0 = arith.constant 0 : i32
    %c0_i32_1 = arith.constant 0 : i32
    return %c0_i32, %c0_i32_0 : i32, i32
  }
  func.func @transform_4(%arg0: i32) -> (i32, i32) {
    %c0_i32 = arith.constant 0 : i32
    %c0_i32_0 = arith.constant 0 : i32
    %c0_i32_1 = arith.constant 0 : i32
    return %c0_i32, %c0_i32_0 : i32, i32
  }
  func.func @transform_5(%arg0: i32) -> (i32, i32) {
    %c0_i32 = arith.constant 0 : i32
    %c0_i32_0 = arith.constant 0 : i32
    %c0_i32_1 = arith.constant 0 : i32
    return %c0_i32, %c0_i32_0 : i32, i32
  }
  func.func @transform_6(%arg0: i32) -> (i32, i32) {
    %c0_i32 = arith.constant 0 : i32
    %c0_i32_0 = arith.constant 0 : i32
    %c0_i32_1 = arith.constant 0 : i32
    return %c0_i32, %c0_i32_0 : i32, i32
  }
  func.func @transform_7(%arg0: i32) -> (i32, i32) {
    %c0_i32 = arith.constant 0 : i32
    %c0_i32_0 = arith.constant 0 : i32
    %c0_i32_1 = arith.constant 0 : i32
    return %c0_i32, %c0_i32_0 : i32, i32
  }
  func.func @transform_8(%arg0: i32) -> (i32, i32) {
    %c0_i32 = arith.constant 0 : i32
    %c0_i32_0 = arith.constant 0 : i32
    return %arg0, %c0_i32 : i32, i32
  }
}

</mosaic_0001>

<llo_original>
// kernel: tpu_custom_call.1
$region0: #{tpu_custom_call.1}
  #allocation0 [shape = 'u32[]', space=smem, size = 0x4, offset = 0x4, fixed_abs, tag = 'smem constant byte address 0x4 - core index']
  #allocation1 [shape = 'u32[72,128]{1,0:T(1,128)}', space=vmem, size = 0x9000, scoped, tag = 'internal scratch']
  #allocation2 [shape = 'f32[1,1]{1,0:T(1,128)S(1)}', space=vmem, size = 0x200, scoped, tag = 'scoped memory for tpu_custom_call.1']
  %s0 = inlined_call_operand.vmem [shape: f32[16,131], index: 0, kind: input, shape index: {}]
  %s1 = inlined_call_operand.hbm [shape: f32[131,192], index: 1, kind: input, shape index: {}]
  %s2 = inlined_call_operand.vmem [shape: f32[1,192], index: 2, kind: input, shape index: {}]
  %s3 = inlined_call_operand.vmem [shape: f32[1,192], index: 3, kind: input, shape index: {}]
  %s4 = inlined_call_operand.vmem [shape: f32[192,20], index: 4, kind: input, shape index: {}]
  %s5 = inlined_call_operand.vmem [shape: f32[1,20], index: 5, kind: input, shape index: {}]
  %s6 = inlined_call_operand.vmem [shape: f32[1,20], index: 6, kind: input, shape index: {}]
  %s7 = inlined_call_operand.<no memory space> [shape: f32[1,1], index: 7, kind: input, shape index: {}]
  %s8 = inlined_call_operand.vmem [shape: f32[16,1], index: 8, kind: output, shape index: {}]
  %s9 = sld [smem:[#allocation0]]
  $region46: #{tpu_custom_call.1} parent=0
    _
  %s11 = ssub.s32 1, %s9
  %s12 = scalar_select 0, %s11, %s9
  %v13 = vstv %s7
  %14 = vst [vmem:[#allocation2] sm:$0x1] %v13
  $region1: #{tpu_custom_call.1} parent=0
    #allocation3 [shape = 'u8[139264]{0}', space=vmem, size = 0x22000, scoped, tag = 'input window, operand 1, single buffered']
    #allocation4 [shape = 's32[1]{0}', space=sflag, size = 0x4, scoped, tag = 'scoped memory for tpu_custom_call.1']
    %15 = vsyncpa [#allocation4], 0
    // Predicated region
    $region2: #{tpu_custom_call.1} parent=1 // pred_check
      _
    $region3: #{tpu_custom_call.1} parent=1 // pred_check_branch
      %17 = sbr.rel (0) target = $region5
    $region4: #{tpu_custom_call.1} parent=1 // pred_region
      _
    $region5: #{tpu_custom_call.1} parent=1 // pred_fallthru
      _
    // Predicated region
    $region6: #{tpu_custom_call.1} parent=1 // pred_check
      _
    $region7: #{tpu_custom_call.1} parent=1 // pred_check_branch
      %19 = sbr.rel (0) target = $region9
    $region8: #{tpu_custom_call.1} parent=1 // pred_region
      %21 = vsyncadd [#allocation4], 0
      %s22 = sshll.u32 %s1, 4
      %s23 = int_to_ptr.hbm [resolvable:$true] %s22
      %s24 = sshll.u32 [#allocation3], 4
      %s25 = int_to_ptr.vmem [resolvable:$true] %s24
      %30 = dma.hbm_to_vmem [thread:$0]  %s23, 4352, %s25, [#allocation4], 256, 256, 16
    $region9: #{tpu_custom_call.1} parent=1 // pred_fallthru
      _
    // Predicated region
    $region10: #{tpu_custom_call.1} parent=1 // pred_check
      _
    $region11: #{tpu_custom_call.1} parent=1 // pred_check_branch
      %32 = sbr.rel (0) target = $region13
    $region12: #{tpu_custom_call.1} parent=1 // pred_region
      _
    $region13: #{tpu_custom_call.1} parent=1 // pred_fallthru
      _
    // Predicated region
    $region14: #{tpu_custom_call.1} parent=1 // pred_check
      _
    $region15: #{tpu_custom_call.1} parent=1 // pred_check_branch
      %34 = sbr.rel (0) target = $region17
    $region16: #{tpu_custom_call.1} parent=1 // pred_region
      _
    $region17: #{tpu_custom_call.1} parent=1 // pred_fallthru
      _
    // Predicated region
    $region18: #{tpu_custom_call.1} parent=1 // pred_check
      _
    $region19: #{tpu_custom_call.1} parent=1 // pred_check_branch
      %36 = sbr.rel (0) target = $region21
    $region20: #{tpu_custom_call.1} parent=1 // pred_region
      _
    $region21: #{tpu_custom_call.1} parent=1 // pred_fallthru
      _
    // Predicated region
    $region22: #{tpu_custom_call.1} parent=1 // pred_check
      _
    $region23: #{tpu_custom_call.1} parent=1 // pred_check_branch
      %38 = sbr.rel (0) target = $region25
    $region24: #{tpu_custom_call.1} parent=1 // pred_region
      _
    $region25: #{tpu_custom_call.1} parent=1 // pred_fallthru
      _
    // Predicated region
    $region26: #{tpu_custom_call.1} parent=1 // pred_check
      _
    $region27: #{tpu_custom_call.1} parent=1 // pred_check_branch
      %40 = sbr.rel (0) target = $region29
    $region28: #{tpu_custom_call.1} parent=1 // pred_region
      _
    $region29: #{tpu_custom_call.1} parent=1 // pred_fallthru
      _
    // Predicated region
    $region30: #{tpu_custom_call.1} parent=1 // pred_check
      _
    $region31: #{tpu_custom_call.1} parent=1 // pred_check_branch
      %42 = sbr.rel (0) target = $region33
    $region32: #{tpu_custom_call.1} parent=1 // pred_region
      _
    $region33: #{tpu_custom_call.1} parent=1 // pred_fallthru
      _
    // Predicated region
    $region34: #{tpu_custom_call.1} parent=1 // pred_check
      _
    $region35: #{tpu_custom_call.1} parent=1 // pred_check_branch
      %44 = sbr.rel (0) target = $region37
    $region36: #{tpu_custom_call.1} parent=1 // pred_region
      %46 = dma.done [#allocation4], 4352
    $region37: #{tpu_custom_call.1} parent=1 // pred_fallthru
      _
    %v47 = vld [vmem:[%s0] sm:$0xff]
    %v48 = vld [vmem:[%s0 + $0x8] sm:$0xff]
    %v49 = vld [vmem:[%s0 + $0x10] sm:$0xff]
    %v50 = vld [vmem:[%s0 + $0x18] sm:$0xff]
    %v51 = vld [vmem:[#allocation3] sm:$0xff]
    %v52 = vld [vmem:[#allocation3 + $0x8] sm:$0xff]
    %v53 = vld [vmem:[#allocation3 + $0x10] sm:$0xff]
    %v54 = vld [vmem:[#allocation3 + $0x18] sm:$0xff]
    %v55 = vld [vmem:[#allocation3 + $0x20] sm:$0xff]
    %v56 = vld [vmem:[#allocation3 + $0x28] sm:$0xff]
    %v57 = vld [vmem:[#allocation3 + $0x30] sm:$0xff]
    %v58 = vld [vmem:[#allocation3 + $0x38] sm:$0xff]
    %v59 = vld [vmem:[#allocation3 + $0x40] sm:$0xff]
    %v60 = vld [vmem:[#allocation3 + $0x48] sm:$0xff]
    %v61 = vld [vmem:[#allocation3 + $0x50] sm:$0xff]
    %v62 = vld [vmem:[#allocation3 + $0x58] sm:$0xff]
    %v63 = vld [vmem:[#allocation3 + $0x60] sm:$0xff]
    %v64 = vld [vmem:[#allocation3 + $0x68] sm:$0xff]
    %v65 = vld [vmem:[#allocation3 + $0x70] sm:$0xff]
    %v66 = vld [vmem:[#allocation3 + $0x78] sm:$0xff]
    %v67 = vld [vmem:[#allocation3 + $0x80] sm:$0xff]
    %v68 = vld [vmem:[#allocation3 + $0x88] sm:$0xff]
    %v69 = vld [vmem:[#allocation3 + $0x90] sm:$0xff]
    %v70 = vld [vmem:[#allocation3 + $0x98] sm:$0xff]
    %v71 = vld [vmem:[#allocation3 + $0xa0] sm:$0xff]
    %v72 = vld [vmem:[#allocation3 + $0xa8] sm:$0xff]
    %v73 = vld [vmem:[#allocation3 + $0xb0] sm:$0xff]
    %v74 = vld [vmem:[#allocation3 + $0xb8] sm:$0xff]
    %v75 = vld [vmem:[#allocation3 + $0xc0] sm:$0xff]
    %v76 = vld [vmem:[#allocation3 + $0xc8] sm:$0xff]
    %v77 = vld [vmem:[#allocation3 + $0xd0] sm:$0xff]
    %v78 = vld [vmem:[#allocation3 + $0xd8] sm:$0xff]
    %v79 = vld [vmem:[#allocation3 + $0xe0] sm:$0xff]
    %v80 = vld [vmem:[#allocation3 + $0xe8] sm:$0xff]
    %v81 = vld [vmem:[#allocation3 + $0xf0] sm:$0xff]
    %v82 = vld [vmem:[#allocation3 + $0xf8] sm:$0xff]
    %v83 = vld [vmem:[#allocation3 + $0x100] sm:$0x7]
    %v84 = vld [vmem:[#allocation3 + $0x108] sm:$0x7]
    %v85 = vld [vmem:[%s2] sm:$0x3]
    %v87 = vperm.slane %v85, 0
    %v88 = vperm.slane %v85, 1
    %vm91 = vcmask 23552
    %v93 = vsel %vm91, %v48, 0
    %v96 = vsel %vm91, %v50, 0
    %vm98 = vcmask 1042432
    %v100 = vsel %vm98, %v83, 0
    %v103 = vsel %vm98, %v84, 0
    %105 = vmatpush.msra.mxu0 %v81
    %106 = vmatpush.msra.mxu0 %v79
    %107 = vmatpush.msra.mxu0 %v77
    %108 = vmatpush.msra.mxu0 %v75
    %109 = vmatpush.msra.mxu0 %v73
    %110 = vmatpush.msra.mxu0 %v71
    %111 = vmatpush.msra.mxu0 %v69
    %112 = vmatpush.msra.mxu0 %v67
    %113 = vmatpush.msra.mxu0 %v65
    %114 = vmatpush.msra.mxu0 %v63
    %115 = vmatpush.msra.mxu0 %v61
    %116 = vmatpush.msra.mxu0 %v59
    %117 = vmatpush.msra.mxu0 %v57
    %118 = vmatpush.msra.mxu0 %v55
    %119 = vmatpush.msra.mxu0 %v53
    %120 = vmatpush.msra.mxu0 %v51
    %121 = vmatmul.f32.gmra.mxu0 %v47
    %v122 = vpop.f32.mrf.mxu0
    %v123 = vadd.f32 %v87, %v122
    %124 = vmatmul.f32.gmra.mxu0 %v49
    %v125 = vpop.f32.mrf.mxu0
    %v126 = vadd.f32 %v87, %v125
    %127 = vdwg.mxu0
    %128 = vmatpush.msra.mxu0 0.0
    %129 = vmatpush.msra.mxu0 0.0
    %130 = vmatpush.msra.mxu0 0.0
    %131 = vmatpush.msra.mxu0 0.0
    %132 = vmatpush.msra.mxu0 0.0
    %133 = vmatpush.msra.mxu0 0.0
    %134 = vmatpush.msra.mxu0 0.0
    %135 = vmatpush.msra.mxu0 0.0
    %136 = vmatpush.msra.mxu0 0.0
    %137 = vmatpush.msra.mxu0 0.0
    %138 = vmatpush.msra.mxu0 0.0
    %139 = vmatpush.msra.mxu0 0.0
    %140 = vmatpush.msra.mxu0 0.0
    %141 = vmatpush.msra.mxu0 0.0
    %142 = vmatpush.msra.mxu0 0.0
    %143 = vmatpush.msra.mxu0 %v100
    %144 = vmatmul.f32.gmra.mxu0 %v93
    %v145 = vpop.f32.mrf.mxu0
    %v146 = vadd.f32 %v123, %v145
    %147 = vmatmul.f32.gmra.mxu0 %v96
    %v148 = vpop.f32.mrf.mxu0
    %v149 = vadd.f32 %v126, %v148
    %150 = vdwg.mxu0
    %151 = vmatpush.msra.mxu0 %v82
    %152 = vmatpush.msra.mxu0 %v80
    %153 = vmatpush.msra.mxu0 %v78
    %154 = vmatpush.msra.mxu0 %v76
    %155 = vmatpush.msra.mxu0 %v74
    %156 = vmatpush.msra.mxu0 %v72
    %157 = vmatpush.msra.mxu0 %v70
    %158 = vmatpush.msra.mxu0 %v68
    %159 = vmatpush.msra.mxu0 %v66
    %160 = vmatpush.msra.mxu0 %v64
    %161 = vmatpush.msra.mxu0 %v62
    %162 = vmatpush.msra.mxu0 %v60
    %163 = vmatpush.msra.mxu0 %v58
    %164 = vmatpush.msra.mxu0 %v56
    %165 = vmatpush.msra.mxu0 %v54
    %166 = vmatpush.msra.mxu0 %v52
    %167 = vmatmul.f32.gmra.mxu0 %v47
    %v168 = vpop.f32.mrf.mxu0
    %v169 = vadd.f32 %v88, %v168
    %170 = vmatmul.f32.gmra.mxu0 %v49
    %v171 = vpop.f32.mrf.mxu0
    %v172 = vadd.f32 %v88, %v171
    %173 = vdwg.mxu0
    %174 = vmatpush.msra.mxu0 0.0
    %175 = vmatpush.msra.mxu0 0.0
    %176 = vmatpush.msra.mxu0 0.0
    %177 = vmatpush.msra.mxu0 0.0
    %178 = vmatpush.msra.mxu0 0.0
    %179 = vmatpush.msra.mxu0 0.0
    %180 = vmatpush.msra.mxu0 0.0
    %181 = vmatpush.msra.mxu0 0.0
    %182 = vmatpush.msra.mxu0 0.0
    %183 = vmatpush.msra.mxu0 0.0
    %184 = vmatpush.msra.mxu0 0.0
    %185 = vmatpush.msra.mxu0 0.0
    %186 = vmatpush.msra.mxu0 0.0
    %187 = vmatpush.msra.mxu0 0.0
    %188 = vmatpush.msra.mxu0 0.0
    %189 = vmatpush.msra.mxu0 %v103
    %190 = vmatmul.f32.gmra.mxu0 %v93
    %v191 = vpop.f32.mrf.mxu0
    %v192 = vadd.f32 %v169, %v191
    %193 = vmatmul.f32.gmra.mxu0 %v96
    %v194 = vpop.f32.mrf.mxu0
    %v195 = vadd.f32 %v172, %v194
    %196 = vdwg.mxu0
    %v197 = vld [vmem:[%s3] sm:$0x3]
    %v199 = vperm.slane %v197, 0
    %v200 = vperm.slane %v197, 1
    %v203 = vmul.f32 %v199, %v146
    %v204 = vmul.f32 %v200, %v192
    %v205 = vmul.f32 %v199, %v149
    %v206 = vmul.f32 %v200, %v195
    %v207 = vmax.f32 %v146, %v203
    %v208 = vmax.f32 %v192, %v204
    %v209 = vmax.f32 %v149, %v205
    %v210 = vmax.f32 %v195, %v206
    %v211 = vld [vmem:[%s4] sm:$0xff]
    %v212 = vld [vmem:[%s4 + $0x8] sm:$0xff]
    %v213 = vld [vmem:[%s4 + $0x10] sm:$0xff]
    %v214 = vld [vmem:[%s4 + $0x18] sm:$0xff]
    %v215 = vld [vmem:[%s4 + $0x20] sm:$0xff]
    %v216 = vld [vmem:[%s4 + $0x28] sm:$0xff]
    %v217 = vld [vmem:[%s4 + $0x30] sm:$0xff]
    %v218 = vld [vmem:[%s4 + $0x38] sm:$0xff]
    %v219 = vld [vmem:[%s4 + $0x40] sm:$0xff]
    %v220 = vld [vmem:[%s4 + $0x48] sm:$0xff]
    %v221 = vld [vmem:[%s4 + $0x50] sm:$0xff]
    %v222 = vld [vmem:[%s4 + $0x58] sm:$0xff]
    %v223 = vld [vmem:[%s4 + $0x60] sm:$0xff]
    %v224 = vld [vmem:[%s4 + $0x68] sm:$0xff]
    %v225 = vld [vmem:[%s4 + $0x70] sm:$0xff]
    %v226 = vld [vmem:[%s4 + $0x78] sm:$0xff]
    %v227 = vld [vmem:[%s4 + $0x80] sm:$0xff]
    %v228 = vld [vmem:[%s4 + $0x88] sm:$0xff]
    %v229 = vld [vmem:[%s4 + $0x90] sm:$0xff]
    %v230 = vld [vmem:[%s4 + $0x98] sm:$0xff]
    %v231 = vld [vmem:[%s4 + $0xa0] sm:$0xff]
    %v232 = vld [vmem:[%s4 + $0xa8] sm:$0xff]
    %v233 = vld [vmem:[%s4 + $0xb0] sm:$0xff]
    %v234 = vld [vmem:[%s4 + $0xb8] sm:$0xff]
    %v235 = vld [vmem:[%s5] sm:$0x1]
    %v237 = vperm.slane %v235, 0
    %vm239 = vcmask 523264
    %v241 = vsel %vm239, %v208, 0
    %v244 = vsel %vm239, %v210, 0
    %246 = vmatpush.msra.mxu0 %v226
    %247 = vmatpush.msra.mxu0 %v225
    %248 = vmatpush.msra.mxu0 %v224
    %249 = vmatpush.msra.mxu0 %v223
    %250 = vmatpush.msra.mxu0 %v222
    %251 = vmatpush.msra.mxu0 %v221
    %252 = vmatpush.msra.mxu0 %v220
    %253 = vmatpush.msra.mxu0 %v219
    %254 = vmatpush.msra.mxu0 %v218
    %255 = vmatpush.msra.mxu0 %v217
    %256 = vmatpush.msra.mxu0 %v216
    %257 = vmatpush.msra.mxu0 %v215
    %258 = vmatpush.msra.mxu0 %v214
    %259 = vmatpush.msra.mxu0 %v213
    %260 = vmatpush.msra.mxu0 %v212
    %261 = vmatpush.msra.mxu0 %v211
    %262 = vmatmul.f32.gmra.mxu0 %v207
    %v263 = vpop.f32.mrf.mxu0
    %v264 = vadd.f32 %v237, %v263
    %265 = vmatmul.f32.gmra.mxu0 %v209
    %v266 = vpop.f32.mrf.mxu0
    %v267 = vadd.f32 %v237, %v266
    %268 = vdwg.mxu0
    %269 = vmatpush.msra.mxu0 0.0
    %270 = vmatpush.msra.mxu0 0.0
    %271 = vmatpush.msra.mxu0 0.0
    %272 = vmatpush.msra.mxu0 0.0
    %273 = vmatpush.msra.mxu0 0.0
    %274 = vmatpush.msra.mxu0 0.0
    %275 = vmatpush.msra.mxu0 0.0
    %276 = vmatpush.msra.mxu0 0.0
    %277 = vmatpush.msra.mxu0 %v234
    %278 = vmatpush.msra.mxu0 %v233
    %279 = vmatpush.msra.mxu0 %v232
    %280 = vmatpush.msra.mxu0 %v231
    %281 = vmatpush.msra.mxu0 %v230
    %282 = vmatpush.msra.mxu0 %v229
    %283 = vmatpush.msra.mxu0 %v228
    %284 = vmatpush.msra.mxu0 %v227
    %285 = vmatmul.f32.gmra.mxu0 %v241
    %v286 = vpop.f32.mrf.mxu0
    %v287 = vadd.f32 %v264, %v286
    %288 = vmatmul.f32.gmra.mxu0 %v244
    %v289 = vpop.f32.mrf.mxu0
    %v290 = vadd.f32 %v267, %v289
    %291 = vdwg.mxu0
    %v292 = vmul.f32 %v287, 0.01
    %v293 = vmul.f32 %v290, 0.01
    %v294 = vmax.f32 %v287, %v292
    %v295 = vmax.f32 %v290, %v293
    %v296 = vld [vmem:[%s6] sm:$0x1]
    %v298 = vperm.slane %v296, 0
    %v300 = vmul.f32 %v294, %v298
    %v301 = vmul.f32 %v295, %v298
    %vm302 = vcmask 162816
    %v303 = vsel %vm302, %v300, 0.0
    %304 = vadd.xlane.f32.xlu0 %v303
    %v305 = vpop.xlane.xlu0 %304
    %v306 = vsel %vm302, %v301, 0.0
    %307 = vadd.xlane.f32.xlu0 %v306
    %v308 = vpop.xlane.xlu0 %307
    %v309 = vld [vmem:[#allocation2] sm:$0x1]
    %v311 = vperm.slane %v309, 0
    %v313 = vadd.f32 %v305, %v311
    %v314 = vadd.f32 %v308, %v311
    %vm315 = vcmask 7168
    %316 = vst.msk [vmem:[%s8] sm:$0xff] %vm315, %v313
    %317 = vst.msk [vmem:[%s8 + $0x8] sm:$0xff] %vm315, %v314
    // Predicated region
    $region38: #{tpu_custom_call.1} parent=1 // pred_check
      _
    $region39: #{tpu_custom_call.1} parent=1 // pred_check_branch
      %319 = sbr.rel (0) target = $region41
    $region40: #{tpu_custom_call.1} parent=1 // pred_region
      _
    $region41: #{tpu_custom_call.1} parent=1 // pred_fallthru
      _
    // Predicated region
    $region42: #{tpu_custom_call.1} parent=1 // pred_check
      _
    $region43: #{tpu_custom_call.1} parent=1 // pred_check_branch
      %321 = sbr.rel (0) target = $region45
    $region44: #{tpu_custom_call.1} parent=1 // pred_region
      _
    $region45: #{tpu_custom_call.1} parent=1 // pred_fallthru
      _
    %322 = vsyncpa [#allocation4], 1

</llo_original>
